<compile_context>
chip_gen: v7x
topology: tpu7x:2x2x1
jax: 0.10.0
libtpu: 0.0.40
codegen_flags: <defaults>
</compile_context>

<pallas_src>
import functools

import jax
import jax.numpy as jnp
from jax.experimental import pallas as pl
from jax.experimental.pallas import tpu as pltpu


def _row_tile(h, cap=128):
    """Row tile: h itself if small, else the largest divisor of h <= cap (prefer multiples of 8)."""
    if h <= cap:
        return h
    divs = [t for t in range(1, cap + 1) if h % t == 0]
    aligned = [t for t in divs if t % 8 == 0]
    return max(aligned) if aligned else max(divs)


def _vmem_limit_bytes():
    cap = 128 * 1024 * 1024
    try:
        cap = int(getattr(pltpu.get_tpu_info(), "vmem_capacity_bytes", cap))
    except Exception:
        pass
    # ~75% of physical VMEM, never above 100 MiB: ~96 MiB on v5e/v6e, ~48 MiB on v7x.
    return min(cap * 3 // 4, 100 * 1024 * 1024)


@functools.partial(jax.jit, static_argnames=("eps",))
def conv_block_forward(x_nchw, w_oihw, bias, gamma, beta, *, eps=1e-5):
    del bias  # cancelled exactly by train-mode BatchNorm mean subtraction
    N, Cin, H, W = x_nchw.shape
    Cout = w_oihw.shape[0]
    if Cin >= 64 or Cout >= 64:
        # TODO(synk): channels-last (th*W, 9*Cin) @ (9*Cin, Cout) im2col path for MXU-sized
        # channel counts; the banded weights below only pay off when Cin/Cout are small.
        raise NotImplementedError("banded-weight path is gated to small channel counts")

    Wp = W + 2
    Hp_pad = ((H + 2 + 7) // 8) * 8        # per-image padded height, sublane-aligned
    K = Wp * Cin                           # matmul K per kernel-row tap
    L = W * Cout                           # lane width of the output (=128 for the demo)
    M = N * H * W                          # BN population size
    th = _row_tile(H)                      # output image-rows per grid step
    HG = H // th
    vmem_limit = _vmem_limit_bytes()

    # ---- tiny XLA-side layout glue (read x from HBM once; no duplicated patches) ----
    x = jnp.transpose(x_nchw, (0, 2, 3, 1))                               # NHWC
    xpad = jnp.pad(x, ((0, 0), (1, Hp_pad - H - 1), (1, 1), (0, 0)))      # (N, Hp_pad, Wp, Cin)
    x2d = xpad.reshape(N * Hp_pad, K)                                     # rows n*Hp_pad+hp, lanes wp*Cin+ci
    # TODO(synk): accept/produce NHWC directly and fold the zero-pad into the kernel
    # (memset VMEM scratch + interior DMA) to drop these extra HBM round-trips.

    # Banded block-Toeplitz weights: wband[kh, wp*Cin+ci, w*Cout+co] = wt[kh, wp-w, ci, co]
    # for 0 <= wp-w <= 2, else 0.  Folds all kw lane shifts into the weight band.
    wt = jnp.transpose(w_oihw, (2, 3, 1, 0))                              # (3,3,Cin,Cout)
    sel = (jnp.arange(Wp)[:, None, None]
           == jnp.arange(3)[None, :, None] + jnp.arange(W)[None, None, :]).astype(wt.dtype)
    wband = jnp.einsum("pkw,hkio->hpiwo", sel, wt).reshape(3, K, L).astype(jnp.bfloat16)

    aligned_rows = (th % 8 == 0) or (HG == 1)

    def conv_tile(x_ref, w_ref, n, i):
        """Conv output tile (th, L) in f32 for image n, row-tile i (shared by both passes)."""
        rstart = n * Hp_pad + i * th
        if aligned_rows:
            rstart = pl.multiple_of(rstart, 8)
        # halo'd row slab, cast to bf16 ONCE (hoisted out of the tap loop)
        xs = x_ref[pl.ds(rstart, th + 2), :].astype(jnp.bfloat16)         # (th+2, K)
        acc = jnp.zeros((th, L), jnp.float32)
        for kh in range(3):                                               # 3 banded matmuls
            acc = acc + jnp.dot(xs[kh:kh + th, :], w_ref[kh],
                                preferred_element_type=jnp.float32)
        return acc

    # ---- Pallas pass 1: conv + fused BN partial stats ONLY (no intermediate y in HBM) ----
    def stats_kernel(x_ref, w_ref, s_ref):
        acc = conv_tile(x_ref, w_ref, pl.program_id(0), pl.program_id(1))
        # per-tile partial BN stats, padded to a full 8-sublane tile (unmasked store)
        s_ref[...] = jnp.concatenate(
            [jnp.sum(acc, axis=0, keepdims=True),
             jnp.sum(acc * acc, axis=0, keepdims=True),
             jnp.zeros((6, L), jnp.float32)], axis=0)

    stats = pl.pallas_call(
        stats_kernel,
        out_shape=jax.ShapeDtypeStruct((N, HG, 8, L), jnp.float32),
        grid_spec=pltpu.PrefetchScalarGridSpec(
            num_scalar_prefetch=0,
            grid=(N, HG),
            in_specs=[
                pl.BlockSpec((N * Hp_pad, K), lambda n, i: (0, 0)),        # resident padded input
                pl.BlockSpec((3, K, L), lambda n, i: (0, 0, 0)),           # resident banded weights
            ],
            out_specs=pl.BlockSpec((None, None, 8, L), lambda n, i: (n, i, 0, 0)),
        ),
        compiler_params=pltpu.CompilerParams(
            dimension_semantics=("parallel", "parallel"),
            vmem_limit_bytes=vmem_limit),
    )(x2d, wband)

    # ---- tiny glue: fold partial stats -> per-channel mean/var, lane-wide scale/shift ----
    # Note: E[y^2]-mean^2 in f32; TODO(synk): shifted/Welford accumulation before scaling up M.
    pc = stats.sum(axis=(0, 1))[:2].reshape(2, W, Cout).sum(axis=1)        # (2, Cout)
    mean = pc[0] / M
    var = pc[1] / M - mean * mean                                          # biased var (PyTorch train BN)
    scale = gamma * jax.lax.rsqrt(var + eps)
    shift = beta - mean * scale
    scale_l = jnp.tile(scale, W).reshape(1, L)                             # lane l -> channel l % Cout
    shift_l = jnp.tile(shift, W).reshape(1, L)

    # ---- Pallas pass 2: conv recompute + BN + ReLU fused, lane-dense f32 output ----
    def conv_bn_relu_kernel(x_ref, w_ref, sc_ref, sh_ref, o_ref):
        acc = conv_tile(x_ref, w_ref, pl.program_id(0), pl.program_id(1))
        o_ref[...] = jnp.maximum(acc * sc_ref[...] + sh_ref[...], 0.0)

    out3d = pl.pallas_call(
        conv_bn_relu_kernel,
        out_shape=jax.ShapeDtypeStruct((N, H, L), jnp.float32),
        grid_spec=pltpu.PrefetchScalarGridSpec(
            num_scalar_prefetch=0,
            grid=(N, HG),
            in_specs=[
                pl.BlockSpec((N * Hp_pad, K), lambda n, i: (0, 0)),        # resident padded input
                pl.BlockSpec((3, K, L), lambda n, i: (0, 0, 0)),           # resident banded weights
                pl.BlockSpec((1, L), lambda n, i: (0, 0)),                 # BN scale per lane
                pl.BlockSpec((1, L), lambda n, i: (0, 0)),                 # BN shift per lane
            ],
            out_specs=pl.BlockSpec((None, th, L), lambda n, i: (n, i, 0)),
        ),
        compiler_params=pltpu.CompilerParams(
            dimension_semantics=("parallel", "parallel"),
            vmem_limit_bytes=vmem_limit),
    )(x2d, wband, scale_l, shift_l)

    # NCHW for PyTorch parity (skip this transpose if the consumer takes NHWC)
    return jnp.transpose(out3d.reshape(N, H, W, Cout), (0, 3, 1, 2))


# ---------------- reference (pure JAX, bias included) ----------------

def conv_block_ref(x, w, b, gamma, beta, eps=1e-5):
    y = jax.lax.conv_general_dilated(
        x, w, window_strides=(1, 1), padding=((1, 1), (1, 1)),
        dimension_numbers=("NCHW", "OIHW", "NCHW"),
    ) + b.reshape(1, -1, 1, 1)
    mean = jnp.mean(y, axis=(0, 2, 3), keepdims=True)
    var = jnp.var(y, axis=(0, 2, 3), keepdims=True)
    yhat = (y - mean) * jax.lax.rsqrt(var + eps)
    return jnp.maximum(yhat * gamma.reshape(1, -1, 1, 1) + beta.reshape(1, -1, 1, 1), 0.0)


if __name__ == "__main__":
    key = jax.random.PRNGKey(0)
    kx, kw, kb, kg, kbeta = jax.random.split(key, 5)

    N, Cin, Cout, H, W = 2, 4, 8, 16, 16   # W * Cout = 128 -> fully lane-dense output

    x = jax.random.normal(kx, (N, Cin, H, W), dtype=jnp.float32)
    w = jax.random.normal(kw, (Cout, Cin, 3, 3), dtype=jnp.float32) * 0.1
    b = jax.random.normal(kb, (Cout,), dtype=jnp.float32) * 0.1
    gamma = 1.0 + 0.1 * jax.random.normal(kg, (Cout,), dtype=jnp.float32)
    beta = 0.1 * jax.random.normal(kbeta, (Cout,), dtype=jnp.float32)

    out = jax.block_until_ready(conv_block_forward(x, w, b, gamma, beta))

    ref = conv_block_ref(x, w, b, gamma, beta)
    assert out.shape == ref.shape == (N, Cout, H, W)
    assert jnp.allclose(out, ref, rtol=2e-2, atol=2e-2), (
        f"max abs err {jnp.max(jnp.abs(out - ref))}")

    print("KERNEL_OK")
</pallas_src>

<mosaic_0001>
module attributes {stable_mosaic.version = 11 : i64} {
  func.func @stats_kernel(%arg0: i32, %arg1: i32, %arg2: memref<48x72xf32, #tpu.memory_space<vmem>>, %arg3: memref<3x72x128xbf16, #tpu.memory_space<vmem>>, %arg4: memref<1x1x8x128xf32, #tpu.memory_space<vmem>>) attributes {dimension_semantics = [#tpu.dimension_semantics<parallel>, #tpu.dimension_semantics<parallel>], iteration_bounds = array<i64: 2, 1>, scalar_prefetch = 0 : i64, scratch_operands = 0 : i64, tpu.core_type = #tpu.core_type<tc>, window_params = [{pipeline_mode = #tpu.pipeline_mode<synchronous>, transform_indices = @transform_0, window_bounds = array<i64: 48, 72>}, {pipeline_mode = #tpu.pipeline_mode<synchronous>, transform_indices = @transform_1, window_bounds = array<i64: 3, 72, 128>}, {transform_indices = @transform_2, window_bounds = array<i64: 1, 1, 8, 128>}]} {
    %c24_i32 = arith.constant 24 : i32
    %0 = arith.muli %arg0, %c24_i32 : i32
    %c16_i32 = arith.constant 16 : i32
    %1 = arith.muli %arg1, %c16_i32 : i32
    %2 = arith.addi %0, %1 : i32
    %3 = tpu.assume_multiple %2, 8 : i32
    %4 = arith.index_cast %3 : i32 to index
    %c0 = arith.constant 0 : index
    %5 = vector.load %arg2[%4, %c0] : memref<48x72xf32, #tpu.memory_space<vmem>>, vector<18x72xf32>
    %6 = arith.truncf %5 : vector<18x72xf32> to vector<18x72xbf16>
    %cst = arith.constant 0.000000e+00 : f32
    %7 = vector.broadcast %cst : f32 to vector<16x128xf32>
    %8 = vector.extract_strided_slice %6 {offsets = [0, 0], sizes = [16, 72], strides = [1, 1]} : vector<18x72xbf16> to vector<16x72xbf16>
    %c0_0 = arith.constant 0 : index
    %c0_1 = arith.constant 0 : index
    %c0_2 = arith.constant 0 : index
    %9 = vector.load %arg3[%c0_0, %c0_1, %c0_2] : memref<3x72x128xbf16, #tpu.memory_space<vmem>>, vector<1x72x128xbf16>
    %10 = vector.shape_cast %9 : vector<1x72x128xbf16> to vector<72x128xbf16>
    %cst_3 = arith.constant dense<0.000000e+00> : vector<16x128xf32>
    %11 = tpu.matmul %8, %10, %cst_3 {dimension_numbers = #tpu.dot_dimension_numbers<[1], [0], [0], [1], [0, 0, 1, 1], [], []>} : vector<16x72xbf16>, vector<72x128xbf16>, vector<16x128xf32> -> vector<16x128xf32>
    %12 = arith.addf %7, %11 : vector<16x128xf32>
    %13 = vector.extract_strided_slice %6 {offsets = [1, 0], sizes = [16, 72], strides = [1, 1]} : vector<18x72xbf16> to vector<16x72xbf16>
    %c1 = arith.constant 1 : index
    %c0_4 = arith.constant 0 : index
    %c0_5 = arith.constant 0 : index
    %14 = vector.load %arg3[%c1, %c0_4, %c0_5] : memref<3x72x128xbf16, #tpu.memory_space<vmem>>, vector<1x72x128xbf16>
    %15 = vector.shape_cast %14 : vector<1x72x128xbf16> to vector<72x128xbf16>
    %cst_6 = arith.constant dense<0.000000e+00> : vector<16x128xf32>
    %16 = tpu.matmul %13, %15, %cst_6 {dimension_numbers = #tpu.dot_dimension_numbers<[1], [0], [0], [1], [0, 0, 1, 1], [], []>} : vector<16x72xbf16>, vector<72x128xbf16>, vector<16x128xf32> -> vector<16x128xf32>
    %17 = arith.addf %12, %16 : vector<16x128xf32>
    %18 = vector.extract_strided_slice %6 {offsets = [2, 0], sizes = [16, 72], strides = [1, 1]} : vector<18x72xbf16> to vector<16x72xbf16>
    %c2 = arith.constant 2 : index
    %c0_7 = arith.constant 0 : index
    %c0_8 = arith.constant 0 : index
    %19 = vector.load %arg3[%c2, %c0_7, %c0_8] : memref<3x72x128xbf16, #tpu.memory_space<vmem>>, vector<1x72x128xbf16>
    %20 = vector.shape_cast %19 : vector<1x72x128xbf16> to vector<72x128xbf16>
    %cst_9 = arith.constant dense<0.000000e+00> : vector<16x128xf32>
    %21 = tpu.matmul %18, %20, %cst_9 {dimension_numbers = #tpu.dot_dimension_numbers<[1], [0], [0], [1], [0, 0, 1, 1], [], []>} : vector<16x72xbf16>, vector<72x128xbf16>, vector<16x128xf32> -> vector<16x128xf32>
    %22 = arith.addf %17, %21 : vector<16x128xf32>
    %cst_10 = arith.constant dense<0.000000e+00> : vector<128xf32>
    %23 = vector.multi_reduction <add>, %22, %cst_10 [0] : vector<16x128xf32> to vector<128xf32>
    %24 = vector.shape_cast %23 : vector<128xf32> to vector<1x128xf32>
    %25 = arith.mulf %22, %22 : vector<16x128xf32>
    %cst_11 = arith.constant dense<0.000000e+00> : vector<128xf32>
    %26 = vector.multi_reduction <add>, %25, %cst_11 [0] : vector<16x128xf32> to vector<128xf32>
    %27 = vector.shape_cast %26 : vector<128xf32> to vector<1x128xf32>
    %cst_12 = arith.constant 0.000000e+00 : f32
    %28 = vector.broadcast %cst_12 : f32 to vector<6x128xf32>
    %29 = tpu.concatenate %24, %27, %28 in 0 : vector<1x128xf32>, vector<1x128xf32>, vector<6x128xf32> -> vector<8x128xf32>
    %c0_13 = arith.constant 0 : index
    %c0_14 = arith.constant 0 : index
    %c0_15 = arith.constant 0 : index
    %c0_16 = arith.constant 0 : index
    %30 = vector.load %arg4[%c0_13, %c0_14, %c0_15, %c0_16] : memref<1x1x8x128xf32, #tpu.memory_space<vmem>>, vector<1x1x8x128xf32>
    %31 = vector.shape_cast %30 : vector<1x1x8x128xf32> to vector<8x128xf32>
    %32 = vector.shape_cast %29 : vector<8x128xf32> to vector<1x1x8x128xf32>
    tpu.vector_store %arg4[%c0_13, %c0_14, %c0_15, %c0_16], %32 {strides = array<i32>} : memref<1x1x8x128xf32, #tpu.memory_space<vmem>>, vector<1x1x8x128xf32>,
    return
  }
  func.func @transform_0(%arg0: i32, %arg1: i32) -> (i32, i32) {
    %c0_i32 = arith.constant 0 : i32
    %c0_i32_0 = arith.constant 0 : i32
    %c0_i32_1 = arith.constant 0 : i32
    return %c0_i32, %c0_i32_0 : i32, i32
  }
  func.func @transform_1(%arg0: i32, %arg1: i32) -> (i32, i32, i32) {
    %c0_i32 = arith.constant 0 : i32
    %c0_i32_0 = arith.constant 0 : i32
    %c0_i32_1 = arith.constant 0 : i32
    %c0_i32_2 = arith.constant 0 : i32
    return %c0_i32, %c0_i32_0, %c0_i32_1 : i32, i32, i32
  }
  func.func @transform_2(%arg0: i32, %arg1: i32) -> (i32, i32, i32, i32) {
    %c0_i32 = arith.constant 0 : i32
    %c0_i32_0 = arith.constant 0 : i32
    %c0_i32_1 = arith.constant 0 : i32
    return %arg0, %arg1, %c0_i32, %c0_i32_0 : i32, i32, i32, i32
  }
}

module attributes {stable_mosaic.version = 11 : i64} {
  func.func @conv_bn_relu_kernel(%arg0: i32, %arg1: i32, %arg2: memref<48x72xf32, #tpu.memory_space<vmem>>, %arg3: memref<3x72x128xbf16, #tpu.memory_space<vmem>>, %arg4: memref<1x128xf32, #tpu.memory_space<vmem>>, %arg5: memref<1x128xf32, #tpu.memory_space<vmem>>, %arg6: memref<1x16x128xf32, #tpu.memory_space<vmem>>) attributes {dimension_semantics = [#tpu.dimension_semantics<parallel>, #tpu.dimension_semantics<parallel>], iteration_bounds = array<i64: 2, 1>, scalar_prefetch = 0 : i64, scratch_operands = 0 : i64, tpu.core_type = #tpu.core_type<tc>, window_params = [{pipeline_mode = #tpu.pipeline_mode<synchronous>, transform_indices = @transform_0, window_bounds = array<i64: 48, 72>}, {pipeline_mode = #tpu.pipeline_mode<synchronous>, transform_indices = @transform_1, window_bounds = array<i64: 3, 72, 128>}, {pipeline_mode = #tpu.pipeline_mode<synchronous>, transform_indices = @transform_2, window_bounds = array<i64: 1, 128>}, {pipeline_mode = #tpu.pipeline_mode<synchronous>, transform_indices = @transform_3, window_bounds = array<i64: 1, 128>}, {transform_indices = @transform_4, window_bounds = array<i64: 1, 16, 128>}]} {
    %c24_i32 = arith.constant 24 : i32
    %0 = arith.muli %arg0, %c24_i32 : i32
    %c16_i32 = arith.constant 16 : i32
    %1 = arith.muli %arg1, %c16_i32 : i32
    %2 = arith.addi %0, %1 : i32
    %3 = tpu.assume_multiple %2, 8 : i32
    %4 = arith.index_cast %3 : i32 to index
    %c0 = arith.constant 0 : index
    %5 = vector.load %arg2[%4, %c0] : memref<48x72xf32, #tpu.memory_space<vmem>>, vector<18x72xf32>
    %6 = arith.truncf %5 : vector<18x72xf32> to vector<18x72xbf16>
    %cst = arith.constant 0.000000e+00 : f32
    %7 = vector.broadcast %cst : f32 to vector<16x128xf32>
    %8 = vector.extract_strided_slice %6 {offsets = [0, 0], sizes = [16, 72], strides = [1, 1]} : vector<18x72xbf16> to vector<16x72xbf16>
    %c0_0 = arith.constant 0 : index
    %c0_1 = arith.constant 0 : index
    %c0_2 = arith.constant 0 : index
    %9 = vector.load %arg3[%c0_0, %c0_1, %c0_2] : memref<3x72x128xbf16, #tpu.memory_space<vmem>>, vector<1x72x128xbf16>
    %10 = vector.shape_cast %9 : vector<1x72x128xbf16> to vector<72x128xbf16>
    %cst_3 = arith.constant dense<0.000000e+00> : vector<16x128xf32>
    %11 = tpu.matmul %8, %10, %cst_3 {dimension_numbers = #tpu.dot_dimension_numbers<[1], [0], [0], [1], [0, 0, 1, 1], [], []>} : vector<16x72xbf16>, vector<72x128xbf16>, vector<16x128xf32> -> vector<16x128xf32>
    %12 = arith.addf %7, %11 : vector<16x128xf32>
    %13 = vector.extract_strided_slice %6 {offsets = [1, 0], sizes = [16, 72], strides = [1, 1]} : vector<18x72xbf16> to vector<16x72xbf16>
    %c1 = arith.constant 1 : index
    %c0_4 = arith.constant 0 : index
    %c0_5 = arith.constant 0 : index
    %14 = vector.load %arg3[%c1, %c0_4, %c0_5] : memref<3x72x128xbf16, #tpu.memory_space<vmem>>, vector<1x72x128xbf16>
    %15 = vector.shape_cast %14 : vector<1x72x128xbf16> to vector<72x128xbf16>
    %cst_6 = arith.constant dense<0.000000e+00> : vector<16x128xf32>
    %16 = tpu.matmul %13, %15, %cst_6 {dimension_numbers = #tpu.dot_dimension_numbers<[1], [0], [0], [1], [0, 0, 1, 1], [], []>} : vector<16x72xbf16>, vector<72x128xbf16>, vector<16x128xf32> -> vector<16x128xf32>
    %17 = arith.addf %12, %16 : vector<16x128xf32>
    %18 = vector.extract_strided_slice %6 {offsets = [2, 0], sizes = [16, 72], strides = [1, 1]} : vector<18x72xbf16> to vector<16x72xbf16>
    %c2 = arith.constant 2 : index
    %c0_7 = arith.constant 0 : index
    %c0_8 = arith.constant 0 : index
    %19 = vector.load %arg3[%c2, %c0_7, %c0_8] : memref<3x72x128xbf16, #tpu.memory_space<vmem>>, vector<1x72x128xbf16>
    %20 = vector.shape_cast %19 : vector<1x72x128xbf16> to vector<72x128xbf16>
    %cst_9 = arith.constant dense<0.000000e+00> : vector<16x128xf32>
    %21 = tpu.matmul %18, %20, %cst_9 {dimension_numbers = #tpu.dot_dimension_numbers<[1], [0], [0], [1], [0, 0, 1, 1], [], []>} : vector<16x72xbf16>, vector<72x128xbf16>, vector<16x128xf32> -> vector<16x128xf32>
    %22 = arith.addf %17, %21 : vector<16x128xf32>
    %c0_10 = arith.constant 0 : index
    %c0_11 = arith.constant 0 : index
    %23 = vector.load %arg4[%c0_10, %c0_11] : memref<1x128xf32, #tpu.memory_space<vmem>>, vector<1x128xf32>
    %24 = vector.broadcast %23 : vector<1x128xf32> to vector<16x128xf32>
    %25 = arith.mulf %22, %24 : vector<16x128xf32>
    %c0_12 = arith.constant 0 : index
    %c0_13 = arith.constant 0 : index
    %26 = vector.load %arg5[%c0_12, %c0_13] : memref<1x128xf32, #tpu.memory_space<vmem>>, vector<1x128xf32>
    %27 = vector.broadcast %26 : vector<1x128xf32> to vector<16x128xf32>
    %28 = arith.addf %25, %27 : vector<16x128xf32>
    %cst_14 = arith.constant 0.000000e+00 : f32
    %29 = vector.broadcast %cst_14 : f32 to vector<16x128xf32>
    %30 = arith.maximumf %28, %29 : vector<16x128xf32>
    %c0_15 = arith.constant 0 : index
    %c0_16 = arith.constant 0 : index
    %c0_17 = arith.constant 0 : index
    %31 = vector.load %arg6[%c0_15, %c0_16, %c0_17] : memref<1x16x128xf32, #tpu.memory_space<vmem>>, vector<1x16x128xf32>
    %32 = vector.shape_cast %31 : vector<1x16x128xf32> to vector<16x128xf32>
    %33 = vector.shape_cast %30 : vector<16x128xf32> to vector<1x16x128xf32>
    tpu.vector_store %arg6[%c0_15, %c0_16, %c0_17], %33 {strides = array<i32>} : memref<1x16x128xf32, #tpu.memory_space<vmem>>, vector<1x16x128xf32>,
    return
  }
  func.func @transform_0(%arg0: i32, %arg1: i32) -> (i32, i32) {
    %c0_i32 = arith.constant 0 : i32
    %c0_i32_0 = arith.constant 0 : i32
    %c0_i32_1 = arith.constant 0 : i32
    return %c0_i32, %c0_i32_0 : i32, i32
  }
  func.func @transform_1(%arg0: i32, %arg1: i32) -> (i32, i32, i32) {
    %c0_i32 = arith.constant 0 : i32
    %c0_i32_0 = arith.constant 0 : i32
    %c0_i32_1 = arith.constant 0 : i32
    %c0_i32_2 = arith.constant 0 : i32
    return %c0_i32, %c0_i32_0, %c0_i32_1 : i32, i32, i32
  }
  func.func @transform_2(%arg0: i32, %arg1: i32) -> (i32, i32) {
    %c0_i32 = arith.constant 0 : i32
    %c0_i32_0 = arith.constant 0 : i32
    %c0_i32_1 = arith.constant 0 : i32
    return %c0_i32, %c0_i32_0 : i32, i32
  }
  func.func @transform_3(%arg0: i32, %arg1: i32) -> (i32, i32) {
    %c0_i32 = arith.constant 0 : i32
    %c0_i32_0 = arith.constant 0 : i32
    %c0_i32_1 = arith.constant 0 : i32
    return %c0_i32, %c0_i32_0 : i32, i32
  }
  func.func @transform_4(%arg0: i32, %arg1: i32) -> (i32, i32, i32) {
    %c0_i32 = arith.constant 0 : i32
    %c0_i32_0 = arith.constant 0 : i32
    return %arg0, %arg1, %c0_i32 : i32, i32, i32
  }
}

</mosaic_0001>

<llo_original>
// kernel: tile.13
$region0: #{tile.13}
  #allocation0 [shape = 's32[1]{0}', space=sflag, size = 0x4, scoped, tag = 'scoped memory for tile.13']
  %s0 = inlined_call_operand.vmem [shape: f32[8], index: 0, kind: input, shape index: {}]
  %s1 = inlined_call_operand.vmem [shape: f32[16,8], index: 1, kind: output, shape index: {}]
  // Predicated region
  $region2: #{tile.13} parent=0 // pred_check
    _
  $region3: #{tile.13} parent=0 // pred_check_branch
    %3 = sbr.rel (0) target = $region5
  $region4: #{tile.13} parent=0 // pred_region
    _
  $region5: #{tile.13} parent=0 // pred_fallthru
    _
  %v4 = vld [vmem:[%s0] ss:$0 sm:$0xff]
  %5 = vst [vmem:[%s1] sm:$0xff] %v4
  %s6 = scalar_lea.vmem %s1, 8
  %7 = vst [vmem:[%s6] sm:$0xff] %v4

// kernel: tile.14
$region0: #{tile.14}
  %s0 = inlined_call_operand.vmem [shape: f32[16,8], index: 0, kind: input, shape index: {}]
  %s1 = inlined_call_operand.hbm [shape: f32[1,128], index: 1, kind: output, shape index: {}]
  $region1: #{tile.14} parent=0
    #allocation0 [shape = 'u8[512]{0}', space=vmem, size = 0x400, scoped, tag = 'operand span for operand 1']
    #allocation1 [shape = 's32[1]{0}', space=sflag, size = 0x4, scoped, tag = 'scoped memory for tile.14']
    #allocation2 [shape = 'u8[4096]{0}', space=vmem, size = 0x1000, scoped, tag = 'scoped mem for output reshape']
    %2 = vsyncpa [#allocation1], 0
    %v3 = vld [vmem:[%s0] sm:$0x1]
    %vm4 = vcmask 64512
    %5 = vst.msk [vmem:[#allocation2] sm:$0x1] %vm4, %v3
    %s6 = scalar_lea.vmem %s0, 15
    %v7 = vld [vmem:[%s6] sm:$0x1]
    %8 = vrot.lane.b32.xlu0 %v7, 120
    %v9 = vpop.permute.xlu0 %8
    %vm10 = vcmask 1048512
    %11 = vst.msk [vmem:[#allocation2] sm:$0x1] %vm10, %v9
    %s12 = scalar_lea.vmem %s0, 14
    %v13 = vld [vmem:[%s12] sm:$0x1]
    %14 = vrot.lane.b32.xlu0 %v13, 112
    %v15 = vpop.permute.xlu0 %14
    %vm16 = vcmask 982912
    %17 = vst.msk [vmem:[#allocation2] sm:$0x1] %vm16, %v15
    %s18 = scalar_lea.vmem %s0, 13
    %v19 = vld [vmem:[%s18] sm:$0x1]
    %20 = vrot.lane.b32.xlu0 %v19, 104
    %v21 = vpop.permute.xlu0 %20
    %vm22 = vcmask 917312
    %23 = vst.msk [vmem:[#allocation2] sm:$0x1] %vm22, %v21
    %s24 = scalar_lea.vmem %s0, 12
    %v25 = vld [vmem:[%s24] sm:$0x1]
    %26 = vrot.lane.b32.xlu0 %v25, 96
    %v27 = vpop.permute.xlu0 %26
    %vm28 = vcmask 851712
    %29 = vst.msk [vmem:[#allocation2] sm:$0x1] %vm28, %v27
    %s30 = scalar_lea.vmem %s0, 11
    %v31 = vld [vmem:[%s30] sm:$0x1]
    %32 = vrot.lane.b32.xlu0 %v31, 88
    %v33 = vpop.permute.xlu0 %32
    %vm34 = vcmask 786112
    %35 = vst.msk [vmem:[#allocation2] sm:$0x1] %vm34, %v33
    %s36 = scalar_lea.vmem %s0, 10
    %v37 = vld [vmem:[%s36] sm:$0x1]
    %38 = vrot.lane.b32.xlu0 %v37, 80
    %v39 = vpop.permute.xlu0 %38
    %vm40 = vcmask 720512
    %41 = vst.msk [vmem:[#allocation2] sm:$0x1] %vm40, %v39
    %s42 = scalar_lea.vmem %s0, 9
    %v43 = vld [vmem:[%s42] sm:$0x1]
    %44 = vrot.lane.b32.xlu0 %v43, 72
    %v45 = vpop.permute.xlu0 %44
    %vm46 = vcmask 654912
    %47 = vst.msk [vmem:[#allocation2] sm:$0x1] %vm46, %v45
    %s48 = scalar_lea.vmem %s0, 8
    %v49 = vld [vmem:[%s48] sm:$0x1]
    %50 = vrot.lane.b32.xlu0 %v49, 64
    %v51 = vpop.permute.xlu0 %50
    %vm52 = vcmask 589312
    %53 = vst.msk [vmem:[#allocation2] sm:$0x1] %vm52, %v51
    %s54 = scalar_lea.vmem %s0, 7
    %v55 = vld [vmem:[%s54] sm:$0x1]
    %56 = vrot.lane.b32.xlu0 %v55, 56
    %v57 = vpop.permute.xlu0 %56
    %vm58 = vcmask 523712
    %59 = vst.msk [vmem:[#allocation2] sm:$0x1] %vm58, %v57
    %s60 = scalar_lea.vmem %s0, 6
    %v61 = vld [vmem:[%s60] sm:$0x1]
    %62 = vrot.lane.b32.xlu0 %v61, 48
    %v63 = vpop.permute.xlu0 %62
    %vm64 = vcmask 458112
    %65 = vst.msk [vmem:[#allocation2] sm:$0x1] %vm64, %v63
    %s66 = scalar_lea.vmem %s0, 5
    %v67 = vld [vmem:[%s66] sm:$0x1]
    %68 = vrot.lane.b32.xlu0 %v67, 40
    %v69 = vpop.permute.xlu0 %68
    %vm70 = vcmask 392512
    %71 = vst.msk [vmem:[#allocation2] sm:$0x1] %vm70, %v69
    %s72 = scalar_lea.vmem %s0, 4
    %v73 = vld [vmem:[%s72] sm:$0x1]
    %74 = vrot.lane.b32.xlu0 %v73, 32
    %v75 = vpop.permute.xlu0 %74
    %vm76 = vcmask 326912
    %77 = vst.msk [vmem:[#allocation2] sm:$0x1] %vm76, %v75
    %s78 = scalar_lea.vmem %s0, 3
    %v79 = vld [vmem:[%s78] sm:$0x1]
    %80 = vrot.lane.b32.xlu0 %v79, 24
    %v81 = vpop.permute.xlu0 %80
    %vm82 = vcmask 261312
    %83 = vst.msk [vmem:[#allocation2] sm:$0x1] %vm82, %v81
    %s84 = scalar_lea.vmem %s0, 2
    %v85 = vld [vmem:[%s84] sm:$0x1]
    %86 = vrot.lane.b32.xlu0 %v85, 16
    %v87 = vpop.permute.xlu0 %86
    %vm88 = vcmask 195712
    %89 = vst.msk [vmem:[#allocation2] sm:$0x1] %vm88, %v87
    %s90 = scalar_lea.vmem %s0, 1
    %v91 = vld [vmem:[%s90] sm:$0x1]
    %92 = vrot.lane.b32.xlu0 %v91, 8
    %v93 = vpop.permute.xlu0 %92
    %vm94 = vcmask 130112
    %95 = vst.msk [vmem:[#allocation2] sm:$0x1] %vm94, %v93
    %s97 = sshllo.u32 0, 1
    %v99 = vld [vmem:[#allocation2] sm:%s97]
    %s100 = sshllo.u32 0, 1
    %101 = vst [vmem:[#allocation0] sm:%s100] %v99
    %s103 = ssub.s32 16, 16
    %104 = vsyncadd [#allocation1], %s103
    %s106 = sshll.u32 [#allocation0], 4
    %s107 = int_to_ptr.vmem [resolvable:$true] %s106
    %109 = dma.vmem_to_hbm [thread:$0]  %s107, 16, %s1, [#allocation1]
    %110 = dma.done [#allocation1], 16
    %111 = vsyncpa [#allocation1], 1

// kernel: conv_block_forward.2
$region0: #{conv_block_forward.2}
  #allocation0 [shape = 'u32[]', space=smem, size = 0x4, offset = 0x4, fixed_abs, tag = 'smem constant byte address 0x4 - core index']
  #allocation1 [shape = 'u32[144,128]{1,0:T(1,128)}', space=vmem, size = 0x12000, scoped, tag = 'internal scratch']
  %s0 = inlined_call_operand.hbm [shape: f32[48,72], index: 0, kind: input, shape index: {}]
  %s1 = inlined_call_operand.hbm [shape: bf16[3,72,128], index: 1, kind: input, shape index: {}]
  %s2 = inlined_call_operand.hbm [shape: f32[2,1,8,128], index: 2, kind: output, shape index: {}]
  %s3 = sld [smem:[#allocation0]]
  $region49: #{conv_block_forward.2} parent=0
    _
  %s5 = ssub.s32 1, %s3
  %s6 = scalar_select 0, %s5, %s3
  $region1: #{conv_block_forward.2} parent=0
    #allocation2 [shape = 'u8[24576]{0}', space=vmem, size = 0x6000, scoped, tag = 'input window, operand 0, single buffered']
    #allocation3 [shape = 's32[2]{0}', space=sflag, size = 0x8, scoped, tag = 'scoped memory for conv_block_forward.2']
    #allocation4 [shape = 's32[2]{0}', space=sflag, size = 0x8, scoped, tag = 'scoped memory for conv_block_forward.2']
    #allocation5 [shape = 'u8[55296]{0}', space=vmem, size = 0xd800, scoped, tag = 'input window, operand 1, single buffered']
    #allocation6 [shape = 's32[1]{0}', space=sflag, size = 0x4, scoped, tag = 'scoped memory for conv_block_forward.2']
    #allocation7 [shape = 'u8[8192]{0}', space=vmem, size = 0x2000, scoped, tag = 'output window, operand 0']
    %7 = vsyncpa [#allocation3], 0
    %8 = vsyncpa [#allocation6], 0
    %9 = vsyncpa [#allocation4], 0
    %s10 = scalar_lea.sflag [#allocation4], 1
    %11 = vsyncpa %s10, 0
    loop: start=0, step=1, limit=4
    $region2: #{conv_block_forward.2} parent=1 // loop_pre_header
      _
    $region3: #{conv_block_forward.2} parent=1 // loop_header
      %s13 = sphi 0, %s17
      %p14 = scmp.ge.s32.totalorder %s13, 4
      %s20 = sphi 0, %s32
      %s21 = sphi 0, %s28
      %s22 = sphi 0, %s20
      %s23 = sphi 0, %s21
      %s24 = sphi 0, %s22
      %s25 = sphi 0, %s23
      %s33 = sphi 0, %s33
      %s35 = sphi 0, %s33
      %s36 = sphi 0, %s35
      %s50 = sphi 0, %s36
      %s54 = sphi 0, %s54
      %s56 = sphi 0, %s54
      %s57 = sphi 0, %s56
      %s71 = sphi 0, %s57
      %s79 = sphi 0, %s81
      %s82 = sphi 0, %s79
      %s83 = sphi 0, %s82
      %s99 = sphi 0, %s83
    $region4: #{conv_block_forward.2} parent=1 // loop_header_branch
      %16 = sbr.rel (%p14) target = $region8
    $region5: #{conv_block_forward.2} parent=1 // loop_body
      %s18 = ssub.s32 %s13, 1
      %s19 = ssub.s32 %s13, 2
      %s26 = sadd.s32 1, %s21
      %p27 = scmp.ge.s32.totalorder %s26, 1
      %s28 = scalar_select %p27, 0, %s26
      %s29 = sadd.s32 1, %s20
      %s30 = scalar_select %p27, %s29, %s20
      %p31 = scmp.ge.s32.totalorder %s30, 2
      %s32 = scalar_select %p31, 0, %s30
      %s34 = sadd.s32 %s33, 1
      %p37 = scmp.eq.s32.totalorder %s13, 1
      %p38 = scmp.ne.s32.totalorder %s33, %s35
      %p39 = scmp.eq.s32.totalorder %s13, 0
      %p40 = por %p38, %p39
      %p41 = scmp.ne.s32.totalorder %s33, %s35
      %p42 = scmp.eq.s32.totalorder %s18, 1
      %p43 = por %p41, %p42
      %p44 = scmp.ne.s32.totalorder %s35, %s36
      %p45 = scmp.eq.s32.totalorder %s18, 0
      %p46 = por %p44, %p45
      %p47 = scmp.ne.s32.totalorder %s35, %s36
      %p48 = scmp.eq.s32.totalorder %s19, 1
      %p49 = por %p47, %p48
      %p51 = scmp.ne.s32.totalorder %s36, %s50
      %p52 = scmp.eq.s32.totalorder %s19, 0
      %p53 = por %p51, %p52
      %s55 = sadd.s32 %s54, 1
      %p58 = scmp.eq.s32.totalorder %s13, 1
      %p59 = scmp.ne.s32.totalorder %s54, %s56
      %p60 = scmp.eq.s32.totalorder %s13, 0
      %p61 = por %p59, %p60
      %p62 = scmp.ne.s32.totalorder %s54, %s56
      %p63 = scmp.eq.s32.totalorder %s18, 1
      %p64 = por %p62, %p63
      %p65 = scmp.ne.s32.totalorder %s56, %s57
      %p66 = scmp.eq.s32.totalorder %s18, 0
      %p67 = por %p65, %p66
      %p68 = scmp.ne.s32.totalorder %s56, %s57
      %p69 = scmp.eq.s32.totalorder %s19, 1
      %p70 = por %p68, %p69
      %p72 = scmp.ne.s32.totalorder %s57, %s71
      %p73 = scmp.eq.s32.totalorder %s19, 0
      %p74 = por %p72, %p73
      %s75 = ssub.s32 %s20, %s32
      %s76 = ssub.s32 %s21, %s28
      %s77 = sor.u32 %s75, %s76
      %p78 = scmp.eq.s32.totalorder %s77, 0
      %s80 = sadd.s32 %s79, 1
      %s81 = scalar_select %p78, %s79, %s80
      %p84 = pneg %p78
      %p85 = scmp.eq.s32.totalorder %s13, 1
      %p86 = por %p84, %p85
      %p87 = scmp.ne.s32.totalorder %s79, %s82
      %p88 = scmp.eq.s32.totalorder %s13, 0
      %p89 = por %p87, %p88
      %p90 = scmp.ne.s32.totalorder %s79, %s82
      %p91 = scmp.eq.s32.totalorder %s18, 1
      %p92 = por %p90, %p91
      %p93 = scmp.ne.s32.totalorder %s82, %s83
      %p94 = scmp.eq.s32.totalorder %s18, 0
      %p95 = por %p93, %p94
      %p96 = scmp.ne.s32.totalorder %s82, %s83
      %p97 = scmp.eq.s32.totalorder %s19, 1
      %p98 = por %p96, %p97
      %p100 = scmp.ne.s32.totalorder %s83, %s99
      %p101 = scmp.eq.s32.totalorder %s19, 0
      %p102 = por %p100, %p101
      %p103 = scmp.le.s32.totalorder 1, %s13
      %p104 = scmp.lt.s32.totalorder %s13, 3
      %p105 = pnand %p103, %p104
      %p106 = pneg %p105
      // Predicated region
      $region9: #{conv_block_forward.2} parent=5 // pred_check
        _
      $region10: #{conv_block_forward.2} parent=5 // pred_check_branch
        %108 = sbr.rel (%p105) target = $region12
      $region11: #{conv_block_forward.2} parent=5 // pred_region
        %s109 = ssub.s32 %s13, 1
        // Predicated region
        $region13: #{conv_block_forward.2} parent=11 // pred_check
          %p110 = pneg %p46
        $region14: #{conv_block_forward.2} parent=11 // pred_check_branch
          %112 = sbr.rel (%p110) target = $region16
        $region15: #{conv_block_forward.2} parent=11 // pred_region
          %s114 = ssub.s32 768, 768
          %115 = vsyncadd [#allocation3], %s114
          %s116 = sshll.u32 [#allocation2], 4
          %s117 = int_to_ptr.vmem [resolvable:$true] %s116
          %122 = dma.hbm_to_vmem [thread:$0]  %s0, 768, %s117, [#allocation3], 128, 128, 8
        $region16: #{conv_block_forward.2} parent=11 // pred_fallthru
          _
        // Predicated region
        $region17: #{conv_block_forward.2} parent=11 // pred_check
          %p123 = pneg %p67
        $region18: #{conv_block_forward.2} parent=11 // pred_check_branch
          %125 = sbr.rel (%p123) target = $region20
        $region19: #{conv_block_forward.2} parent=11 // pred_region
          %s127 = ssub.s32 1728, 1728
          %128 = vsyncadd [#allocation6], %s127
          %s129 = sshll.u32 [#allocation5], 4
          %s130 = int_to_ptr.vmem [resolvable:$true] %s129
          %135 = dma.hbm_to_vmem [thread:$0]  %s1, 1728, %s130, [#allocation6], 64, 64, 4
        $region20: #{conv_block_forward.2} parent=11 // pred_fallthru
          _
      $region12: #{conv_block_forward.2} parent=5 // pred_fallthru
        _
      %p136 = scmp.lt.s32.totalorder %s13, 2
      // Predicated region
      $region21: #{conv_block_forward.2} parent=5 // pred_check
        %p137 = pneg %p136
      $region22: #{conv_block_forward.2} parent=5 // pred_check_branch
        %139 = sbr.rel (%p137) target = $region24
      $region23: #{conv_block_forward.2} parent=5 // pred_region
        _
      $region24: #{conv_block_forward.2} parent=5 // pred_fallthru
        _
      %p140 = scmp.le.s32.totalorder 1, %s13
      %p141 = scmp.lt.s32.totalorder %s13, 3
      %p142 = pnand %p140, %p141
      %p143 = pneg %p142
      // Predicated region
      $region25: #{conv_block_forward.2} parent=5 // pred_check
        _
      $region26: #{conv_block_forward.2} parent=5 // pred_check_branch
        %145 = sbr.rel (%p142) target = $region28
      $region27: #{conv_block_forward.2} parent=5 // pred_region
        %s146 = ssub.s32 %s13, 1
        // Predicated region
        $region29: #{conv_block_forward.2} parent=27 // pred_check
          %p147 = pneg %p46
        $region30: #{conv_block_forward.2} parent=27 // pred_check_branch
          %149 = sbr.rel (%p147) target = $region32
        $region31: #{conv_block_forward.2} parent=27 // pred_region
          %150 = dma.done [#allocation3], 768
        $region32: #{conv_block_forward.2} parent=27 // pred_fallthru
          _
        // Predicated region
        $region33: #{conv_block_forward.2} parent=27 // pred_check
          %p151 = pneg %p67
        $region34: #{conv_block_forward.2} parent=27 // pred_check_branch
          %153 = sbr.rel (%p151) target = $region36
        $region35: #{conv_block_forward.2} parent=27 // pred_region
          %154 = dma.done [#allocation6], 1728
        $region36: #{conv_block_forward.2} parent=27 // pred_fallthru
          _
        %p155 = pneg %p46
        %p156 = pneg %p43
        %p157 = pneg %p67
        %p158 = pneg %p64
        %p159 = pneg %p95
        %p160 = pneg %p92
        %s161 = sand.u32 %s82, 1
        %s162 = scalar_lea.sflag [#allocation4], %s161
        %s163 = sand.u32 %s82, 1
        %s164 = smul.addr %s163, 8
        %s165 = scalar_lea.vmem [#allocation7], %s164
        %s167 = smul.u32 %s22, 24
        %s168 = smul.u32 %s23, 16
        %s169 = sadd.s32 %s167, %s168
        %s170 = scalar_lea.vmem [#allocation2], %s169
        %v171 = vld [vmem:[%s170] sm:$0xff]
        %v172 = vld [vmem:[%s170 + $0x8] sm:$0xff]
        %v173 = vld [vmem:[%s170 + $0x10] sm:$0x3]
        %v174 = vpack.c.bf16 %v172, %v171
        %v175 = vpack.c.bf16 %v173, %v173
        %v176 = vld [vmem:[#allocation5] sm:$0xf]
        %v177 = vld [vmem:[#allocation5 + $0x4] sm:$0xf]
        %v178 = vld [vmem:[#allocation5 + $0x8] sm:$0xf]
        %v179 = vld [vmem:[#allocation5 + $0xc] sm:$0xf]
        %v180 = vld [vmem:[#allocation5 + $0x10] sm:$0xf]
        %v181 = vld [vmem:[#allocation5 + $0x14] sm:$0xf]
        %v182 = vld [vmem:[#allocation5 + $0x18] sm:$0xf]
        %v183 = vld [vmem:[#allocation5 + $0x1c] sm:$0xf]
        %v184 = vld [vmem:[#allocation5 + $0x20] sm:$0xf]
        %s185 = scalar_lea.vmem [#allocation5], 36
        %v186 = vld [vmem:[%s185] sm:$0xf]
        %v187 = vld [vmem:[%s185 + $0x4] sm:$0xf]
        %v188 = vld [vmem:[%s185 + $0x8] sm:$0xf]
        %v189 = vld [vmem:[%s185 + $0xc] sm:$0xf]
        %v190 = vld [vmem:[%s185 + $0x10] sm:$0xf]
        %v191 = vld [vmem:[%s185 + $0x14] sm:$0xf]
        %v192 = vld [vmem:[%s185 + $0x18] sm:$0xf]
        %v193 = vld [vmem:[%s185 + $0x1c] sm:$0xf]
        %v194 = vld [vmem:[%s185 + $0x20] sm:$0xf]
        %vm195 = vsmask.f32 7424
        %v197 = vshrl.u32 %v174, 16
        %v199 = vshll.u32 %v174, 16
        %v201 = vrot.slane %v199, 1
        %v202 = vor.u32 %v197, %v201
        %v204 = vshll.u32 %v175, 16
        %v206 = vrot.slane %v204, 1
        %v207 = vsel %vm195, %v202, %v206
        %v217 = vunpack.c.l.b16 %v186
        %v218 = vunpack.c.l.b16 %v187
        %v219 = vunpack.c.l.b16 %v188
        %v220 = vunpack.c.l.b16 %v189
        %v221 = vunpack.c.l.b16 %v190
        %v222 = vunpack.c.l.b16 %v191
        %v223 = vunpack.c.l.b16 %v192
        %v224 = vunpack.c.l.b16 %v193
        %v225 = vunpack.c.l.b16 %v194
        %v226 = vpack.c.b16 %v218, %v217
        %v227 = vpack.c.b16 %v220, %v219
        %v228 = vpack.c.b16 %v222, %v221
        %v229 = vpack.c.b16 %v224, %v223
        %v230 = vpack.c.b16 %v225, %v225
        %vm235 = vcmask 588800
        %v237 = vsel %vm235, %v207, 0
        %vm239 = vcmask 1043456
        %v241 = vsel %vm239, %v230, 0
        %243 = vmatprep.subr.bf16.mxu0 0
        %244 = vmatpush1.bf16.msra.mxu0 %v226
        %245 = vmatprep.subr.bf16.mxu0 0
        %246 = vmatpush1.bf16.msra.mxu0 %v227
        %247 = vmatprep.subr.bf16.mxu0 0
        %248 = vmatpush1.bf16.msra.mxu0 %v228
        %249 = vmatprep.subr.bf16.mxu0 0
        %250 = vmatpush1.bf16.msra.mxu0 %v229
        %251 = vmatprep.subr.bf16.mxu0 0
        %252 = vmatpush1.bf16.msra.mxu0 %v241
        %253 = vmatprep.subr.bf16.mxu0 0
        %254 = vmatpush1.bf16.msra.mxu0 0
        %255 = vmatprep.subr.bf16.mxu0 0
        %256 = vmatpush1.bf16.msra.mxu0 0
        %257 = vmatprep.subr.bf16.mxu0 0
        %258 = vmatpush1.bf16.msra.mxu0 0
        %259 = vmatprep.subr.bf16.mxu0 0
        %260 = vmatpush1.bf16.msra.mxu0 0
        %261 = vmatprep.subr.bf16.mxu0 0
        %262 = vmatpush1.bf16.msra.mxu0 0
        %263 = vmatprep.subr.bf16.mxu0 0
        %264 = vmatpush1.bf16.msra.mxu0 0
        %265 = vmatprep.subr.bf16.mxu0 0
        %266 = vmatpush1.bf16.msra.mxu0 0
        %267 = vmatprep.subr.bf16.mxu0 0
        %268 = vmatpush1.bf16.msra.mxu0 0
        %269 = vmatprep.subr.bf16.mxu0 0
        %270 = vmatpush1.bf16.msra.mxu0 0
        %271 = vmatprep.subr.bf16.mxu0 0
        %272 = vmatpush1.bf16.msra.mxu0 0
        %273 = vmatprep.subr.bf16.mxu0 0
        %274 = vmatpush1.bf16.msra.mxu0 0
        %275 = vmatprep.mubr.bf16.mxu0 0
        %276 = vmatmul.mubr.bf16.gmra.mrb[0].mxu0 %v237
        %v277 = vpop.f32.mrb[0].mxu0
        %v278 = vadd.f32 0.0, %v277
        %v279 = vpop.f32.mrb[0].mxu0
        %v280 = vpop.f32.mrb[0].mxu0
        %v281 = vadd.f32 0.0, %v280
        %v282 = vpop.f32.mrb[0].mxu0
        %283 = vdwg.mxu0
        %v293 = vunpack.c.l.b16 %v176
        %v294 = vunpack.c.l.b16 %v177
        %v295 = vunpack.c.l.b16 %v178
        %v296 = vunpack.c.l.b16 %v179
        %v297 = vunpack.c.l.b16 %v180
        %v298 = vunpack.c.l.b16 %v181
        %v299 = vunpack.c.l.b16 %v182
        %v300 = vunpack.c.l.b16 %v183
        %v301 = vunpack.c.l.b16 %v184
        %v302 = vpack.c.b16 %v294, %v293
        %v303 = vpack.c.b16 %v296, %v295
        %v304 = vpack.c.b16 %v298, %v297
        %v305 = vpack.c.b16 %v300, %v299
        %v306 = vpack.c.b16 %v301, %v301
        %v311 = vsel %vm235, %v174, 0
        %v314 = vsel %vm239, %v306, 0
        %316 = vmatprep.subr.bf16.mxu0 0
        %317 = vmatpush1.bf16.msra.mxu0 %v302
        %318 = vmatprep.subr.bf16.mxu0 0
        %319 = vmatpush1.bf16.msra.mxu0 %v303
        %320 = vmatprep.subr.bf16.mxu0 0
        %321 = vmatpush1.bf16.msra.mxu0 %v304
        %322 = vmatprep.subr.bf16.mxu0 0
        %323 = vmatpush1.bf16.msra.mxu0 %v305
        %324 = vmatprep.subr.bf16.mxu0 0
        %325 = vmatpush1.bf16.msra.mxu0 %v314
        %326 = vmatprep.subr.bf16.mxu0 0
        %327 = vmatpush1.bf16.msra.mxu0 0
        %328 = vmatprep.subr.bf16.mxu0 0
        %329 = vmatpush1.bf16.msra.mxu0 0
        %330 = vmatprep.subr.bf16.mxu0 0
        %331 = vmatpush1.bf16.msra.mxu0 0
        %332 = vmatprep.subr.bf16.mxu0 0
        %333 = vmatpush1.bf16.msra.mxu0 0
        %334 = vmatprep.subr.bf16.mxu0 0
        %335 = vmatpush1.bf16.msra.mxu0 0
        %336 = vmatprep.subr.bf16.mxu0 0
        %337 = vmatpush1.bf16.msra.mxu0 0
        %338 = vmatprep.subr.bf16.mxu0 0
        %339 = vmatpush1.bf16.msra.mxu0 0
        %340 = vmatprep.subr.bf16.mxu0 0
        %341 = vmatpush1.bf16.msra.mxu0 0
        %342 = vmatprep.subr.bf16.mxu0 0
        %343 = vmatpush1.bf16.msra.mxu0 0
        %344 = vmatprep.subr.bf16.mxu0 0
        %345 = vmatpush1.bf16.msra.mxu0 0
        %346 = vmatprep.subr.bf16.mxu0 0
        %347 = vmatpush1.bf16.msra.mxu0 0
        %348 = vmatprep.mubr.bf16.mxu0 0
        %349 = vmatmul.mubr.bf16.gmra.mrb[0].mxu0 %v311
        %v350 = vpop.f32.mrb[0].mxu0
        %v351 = vadd.f32 %v278, %v350
        %v352 = vpop.f32.mrb[0].mxu0
        %v353 = vpop.f32.mrb[0].mxu0
        %v354 = vadd.f32 %v281, %v353
        %v355 = vpop.f32.mrb[0].mxu0
        %356 = vdwg.mxu0
        %s357 = scalar_lea.vmem [#allocation5], 72
        %v358 = vld [vmem:[%s357] sm:$0xf]
        %v359 = vld [vmem:[%s357 + $0x4] sm:$0xf]
        %v360 = vld [vmem:[%s357 + $0x8] sm:$0xf]
        %v361 = vld [vmem:[%s357 + $0xc] sm:$0xf]
        %v362 = vld [vmem:[%s357 + $0x10] sm:$0xf]
        %v363 = vld [vmem:[%s357 + $0x14] sm:$0xf]
        %v364 = vld [vmem:[%s357 + $0x18] sm:$0xf]
        %v365 = vld [vmem:[%s357 + $0x1c] sm:$0xf]
        %v366 = vld [vmem:[%s357 + $0x20] sm:$0xf]
        %vm369 = vcmask 1046528
        %v370 = vrot.slane %v174, 1
        %v371 = vrot.slane %v175, 1
        %v372 = vsel %vm369, %v370, %v371
        %v382 = vunpack.c.l.b16 %v358
        %v383 = vunpack.c.l.b16 %v359
        %v384 = vunpack.c.l.b16 %v360
        %v385 = vunpack.c.l.b16 %v361
        %v386 = vunpack.c.l.b16 %v362
        %v387 = vunpack.c.l.b16 %v363
        %v388 = vunpack.c.l.b16 %v364
        %v389 = vunpack.c.l.b16 %v365
        %v390 = vunpack.c.l.b16 %v366
        %v391 = vpack.c.b16 %v383, %v382
        %v392 = vpack.c.b16 %v385, %v384
        %v393 = vpack.c.b16 %v387, %v386
        %v394 = vpack.c.b16 %v389, %v388
        %v395 = vpack.c.b16 %v390, %v390
        %v401 = vsel %vm235, %v372, 0
        %v404 = vsel %vm239, %v395, 0
        %406 = vmatprep.subr.bf16.mxu0 0
        %407 = vmatpush1.bf16.msra.mxu0 %v391
        %408 = vmatprep.subr.bf16.mxu0 0
        %409 = vmatpush1.bf16.msra.mxu0 %v392
        %410 = vmatprep.subr.bf16.mxu0 0
        %411 = vmatpush1.bf16.msra.mxu0 %v393
        %412 = vmatprep.subr.bf16.mxu0 0
        %413 = vmatpush1.bf16.msra.mxu0 %v394
        %414 = vmatprep.subr.bf16.mxu0 0
        %415 = vmatpush1.bf16.msra.mxu0 %v404
        %416 = vmatprep.subr.bf16.mxu0 0
        %417 = vmatpush1.bf16.msra.mxu0 0
        %418 = vmatprep.subr.bf16.mxu0 0
        %419 = vmatpush1.bf16.msra.mxu0 0
        %420 = vmatprep.subr.bf16.mxu0 0
        %421 = vmatpush1.bf16.msra.mxu0 0
        %422 = vmatprep.subr.bf16.mxu0 0
        %423 = vmatpush1.bf16.msra.mxu0 0
        %424 = vmatprep.subr.bf16.mxu0 0
        %425 = vmatpush1.bf16.msra.mxu0 0
        %426 = vmatprep.subr.bf16.mxu0 0
        %427 = vmatpush1.bf16.msra.mxu0 0
        %428 = vmatprep.subr.bf16.mxu0 0
        %429 = vmatpush1.bf16.msra.mxu0 0
        %430 = vmatprep.subr.bf16.mxu0 0
        %431 = vmatpush1.bf16.msra.mxu0 0
        %432 = vmatprep.subr.bf16.mxu0 0
        %433 = vmatpush1.bf16.msra.mxu0 0
        %434 = vmatprep.subr.bf16.mxu0 0
        %435 = vmatpush1.bf16.msra.mxu0 0
        %436 = vmatprep.subr.bf16.mxu0 0
        %437 = vmatpush1.bf16.msra.mxu0 0
        %438 = vmatprep.mubr.bf16.mxu0 0
        %439 = vmatmul.mubr.bf16.gmra.mrb[0].mxu0 %v401
        %v440 = vpop.f32.mrb[0].mxu0
        %v441 = vadd.f32 0.0, %v440
        %v442 = vpop.f32.mrb[0].mxu0
        %v443 = vpop.f32.mrb[0].mxu0
        %v444 = vadd.f32 0.0, %v443
        %v445 = vpop.f32.mrb[0].mxu0
        %446 = vdwg.mxu0
        %v447 = vadd.f32 %v351, %v441
        %v448 = vadd.f32 %v354, %v444
        %v449 = vadd.f32 %v447, %v448
        %v450 = vrot.slane %v449, 4
        %v451 = vadd.f32 %v449, %v450
        %v452 = vrot.slane %v451, 2
        %v453 = vadd.f32 %v451, %v452
        %v454 = vrot.slane %v453, 1
        %v455 = vadd.f32 %v453, %v454
        %v456 = vmul.f32 %v447, %v447
        %v457 = vmul.f32 %v448, %v448
        %v458 = vadd.f32 %v456, %v457
        %v459 = vrot.slane %v458, 4
        %v460 = vadd.f32 %v458, %v459
        %v461 = vrot.slane %v460, 2
        %v462 = vadd.f32 %v460, %v461
        %v463 = vrot.slane %v462, 1
        %v464 = vadd.f32 %v462, %v463
        %vm465 = vcmask 1040384
        %v466 = vsel %vm465, %v455, %v464
        %vm467 = vcmask 1041408
        %v468 = vsel %vm467, %v466, 0.0
        %469 = vst [vmem:[%s165] sm:$0xff] %v468
        %s470 = sand.u32 %s82, 1
        %s471 = scalar_lea.sflag [#allocation4], %s470
        %s472 = sand.u32 %s82, 1
        %s473 = smul.addr %s472, 8
        %s474 = scalar_lea.vmem [#allocation7], %s473
        // Predicated region
        $region37: #{conv_block_forward.2} parent=27 // pred_check
          %p475 = pneg %p92
        $region38: #{conv_block_forward.2} parent=27 // pred_check_branch
          %477 = sbr.rel (%p475) target = $region40
        $region39: #{conv_block_forward.2} parent=27 // pred_region
          %s479 = ssub.s32 128, 128
          %480 = vsyncadd %s471, %s479
          %s481 = sadd.s32 %s23, %s22
          %s482 = smul.addr %s481, 128
          %s483 = scalar_lea.hbm %s2, %s482
          %s485 = sshll.u32 %s474, 4
          %s486 = int_to_ptr.vmem [resolvable:$true] %s485
          %488 = dma.vmem_to_hbm [thread:$0]  %s486, 128, %s483, %s471
        $region40: #{conv_block_forward.2} parent=27 // pred_fallthru
          _
      $region28: #{conv_block_forward.2} parent=5 // pred_fallthru
        _
      %p489 = scmp.le.s32.totalorder 2, %s13
      // Predicated region
      $region41: #{conv_block_forward.2} parent=5 // pred_check
        %p490 = pneg %p489
      $region42: #{conv_block_forward.2} parent=5 // pred_check_branch
        %492 = sbr.rel (%p490) target = $region44
      $region43: #{conv_block_forward.2} parent=5 // pred_region
        %s493 = ssub.s32 %s13, 2
        // Predicated region
        $region45: #{conv_block_forward.2} parent=43 // pred_check
          %p494 = pneg %p98
        $region46: #{conv_block_forward.2} parent=43 // pred_check_branch
          %496 = sbr.rel (%p494) target = $region48
        $region47: #{conv_block_forward.2} parent=43 // pred_region
          %s497 = sand.u32 %s83, 1
          %s498 = scalar_lea.sflag [#allocation4], %s497
          %s499 = sand.u32 %s83, 1
          %s500 = smul.addr %s499, 8
          %s501 = scalar_lea.vmem [#allocation7], %s500
          %502 = dma.done %s498, 128
        $region48: #{conv_block_forward.2} parent=43 // pred_fallthru
          _
      $region44: #{conv_block_forward.2} parent=5 // pred_fallthru
        _
    $region6: #{conv_block_forward.2} parent=1 // loop_footer
      %s17 = sadd.s32 1, %s13
    $region7: #{conv_block_forward.2} parent=1 // loop_footer_branch
      %12 = sbr.rel target = $region3
    $region8: #{conv_block_forward.2} parent=1 // loop_exit
      _
    %503 = vsyncpa [#allocation3], 1
    %s504 = scalar_lea.sflag [#allocation3], 1
    %505 = vsyncpa %s504, 1
    %506 = vsyncpa [#allocation6], 1
    %507 = vsyncpa [#allocation4], 1
    %s508 = scalar_lea.sflag [#allocation4], 1
    %509 = vsyncpa %s508, 1

// kernel: conv_block_forward.3
$region0: #{conv_block_forward.3}
  #allocation0 [shape = 'u32[]', space=smem, size = 0x4, offset = 0x4, fixed_abs, tag = 'smem constant byte address 0x4 - core index']
  #allocation1 [shape = 'u32[144,128]{1,0:T(1,128)}', space=vmem, size = 0x12000, scoped, tag = 'internal scratch']
  %s0 = inlined_call_operand.hbm [shape: f32[48,72], index: 0, kind: input, shape index: {}]
  %s1 = inlined_call_operand.hbm [shape: bf16[3,72,128], index: 1, kind: input, shape index: {}]
  %s2 = inlined_call_operand.hbm [shape: f32[1,128], index: 2, kind: input, shape index: {}]
  %s3 = inlined_call_operand.hbm [shape: f32[1,128], index: 3, kind: input, shape index: {}]
  %s4 = inlined_call_operand.hbm [shape: f32[2,16,128], index: 4, kind: output, shape index: {}]
  %s5 = sld [smem:[#allocation0]]
  $region65: #{conv_block_forward.3} parent=0
    _
  %s7 = ssub.s32 1, %s5
  %s8 = scalar_select 0, %s7, %s5
  $region1: #{conv_block_forward.3} parent=0
    #allocation2 [shape = 'u8[24576]{0}', space=vmem, size = 0x6000, scoped, tag = 'input window, operand 0, single buffered']
    #allocation3 [shape = 's32[2]{0}', space=sflag, size = 0x8, scoped, tag = 'scoped memory for conv_block_forward.3']
    #allocation4 [shape = 's32[2]{0}', space=sflag, size = 0x8, scoped, tag = 'scoped memory for conv_block_forward.3']
    #allocation5 [shape = 'u8[55296]{0}', space=vmem, size = 0xd800, scoped, tag = 'input window, operand 1, single buffered']
    #allocation6 [shape = 's32[1]{0}', space=sflag, size = 0x4, scoped, tag = 'scoped memory for conv_block_forward.3']
    #allocation7 [shape = 'u8[512]{0}', space=vmem, size = 0x400, scoped, tag = 'input window, operand 2, single buffered']
    #allocation8 [shape = 'u8[512]{0}', space=vmem, size = 0x400, scoped, tag = 'input window, operand 3, single buffered']
    #allocation9 [shape = 's32[1]{0}', space=sflag, size = 0x4, scoped, tag = 'scoped memory for conv_block_forward.3']
    #allocation10 [shape = 'u8[16384]{0}', space=vmem, size = 0x4000, scoped, tag = 'output window, operand 0']
    %9 = vsyncpa [#allocation3], 0
    %10 = vsyncpa [#allocation6], 0
    %11 = vsyncpa [#allocation9], 0
    %12 = vsyncpa [#allocation4], 0
    %s13 = scalar_lea.sflag [#allocation4], 1
    %14 = vsyncpa %s13, 0
    loop: start=0, step=1, limit=4
    $region2: #{conv_block_forward.3} parent=1 // loop_pre_header
      _
    $region3: #{conv_block_forward.3} parent=1 // loop_header
      %s16 = sphi 0, %s20
      %p17 = scmp.ge.s32.totalorder %s16, 4
      %s23 = sphi 0, %s35
      %s24 = sphi 0, %s31
      %s25 = sphi 0, %s23
      %s26 = sphi 0, %s24
      %s27 = sphi 0, %s25
      %s28 = sphi 0, %s26
      %s36 = sphi 0, %s36
      %s38 = sphi 0, %s36
      %s39 = sphi 0, %s38
      %s53 = sphi 0, %s39
      %s57 = sphi 0, %s57
      %s59 = sphi 0, %s57
      %s60 = sphi 0, %s59
      %s74 = sphi 0, %s60
      %s78 = sphi 0, %s78
      %s80 = sphi 0, %s78
      %s81 = sphi 0, %s80
      %s95 = sphi 0, %s81
      %s99 = sphi 0, %s99
      %s101 = sphi 0, %s99
      %s102 = sphi 0, %s101
      %s116 = sphi 0, %s102
      %s124 = sphi 0, %s126
      %s127 = sphi 0, %s124
      %s128 = sphi 0, %s127
      %s144 = sphi 0, %s128
    $region4: #{conv_block_forward.3} parent=1 // loop_header_branch
      %19 = sbr.rel (%p17) target = $region8
    $region5: #{conv_block_forward.3} parent=1 // loop_body
      %s21 = ssub.s32 %s16, 1
      %s22 = ssub.s32 %s16, 2
      %s29 = sadd.s32 1, %s24
      %p30 = scmp.ge.s32.totalorder %s29, 1
      %s31 = scalar_select %p30, 0, %s29
      %s32 = sadd.s32 1, %s23
      %s33 = scalar_select %p30, %s32, %s23
      %p34 = scmp.ge.s32.totalorder %s33, 2
      %s35 = scalar_select %p34, 0, %s33
      %s37 = sadd.s32 %s36, 1
      %p40 = scmp.eq.s32.totalorder %s16, 1
      %p41 = scmp.ne.s32.totalorder %s36, %s38
      %p42 = scmp.eq.s32.totalorder %s16, 0
      %p43 = por %p41, %p42
      %p44 = scmp.ne.s32.totalorder %s36, %s38
      %p45 = scmp.eq.s32.totalorder %s21, 1
      %p46 = por %p44, %p45
      %p47 = scmp.ne.s32.totalorder %s38, %s39
      %p48 = scmp.eq.s32.totalorder %s21, 0
      %p49 = por %p47, %p48
      %p50 = scmp.ne.s32.totalorder %s38, %s39
      %p51 = scmp.eq.s32.totalorder %s22, 1
      %p52 = por %p50, %p51
      %p54 = scmp.ne.s32.totalorder %s39, %s53
      %p55 = scmp.eq.s32.totalorder %s22, 0
      %p56 = por %p54, %p55
      %s58 = sadd.s32 %s57, 1
      %p61 = scmp.eq.s32.totalorder %s16, 1
      %p62 = scmp.ne.s32.totalorder %s57, %s59
      %p63 = scmp.eq.s32.totalorder %s16, 0
      %p64 = por %p62, %p63
      %p65 = scmp.ne.s32.totalorder %s57, %s59
      %p66 = scmp.eq.s32.totalorder %s21, 1
      %p67 = por %p65, %p66
      %p68 = scmp.ne.s32.totalorder %s59, %s60
      %p69 = scmp.eq.s32.totalorder %s21, 0
      %p70 = por %p68, %p69
      %p71 = scmp.ne.s32.totalorder %s59, %s60
      %p72 = scmp.eq.s32.totalorder %s22, 1
      %p73 = por %p71, %p72
      %p75 = scmp.ne.s32.totalorder %s60, %s74
      %p76 = scmp.eq.s32.totalorder %s22, 0
      %p77 = por %p75, %p76
      %s79 = sadd.s32 %s78, 1
      %p82 = scmp.eq.s32.totalorder %s16, 1
      %p83 = scmp.ne.s32.totalorder %s78, %s80
      %p84 = scmp.eq.s32.totalorder %s16, 0
      %p85 = por %p83, %p84
      %p86 = scmp.ne.s32.totalorder %s78, %s80
      %p87 = scmp.eq.s32.totalorder %s21, 1
      %p88 = por %p86, %p87
      %p89 = scmp.ne.s32.totalorder %s80, %s81
      %p90 = scmp.eq.s32.totalorder %s21, 0
      %p91 = por %p89, %p90
      %p92 = scmp.ne.s32.totalorder %s80, %s81
      %p93 = scmp.eq.s32.totalorder %s22, 1
      %p94 = por %p92, %p93
      %p96 = scmp.ne.s32.totalorder %s81, %s95
      %p97 = scmp.eq.s32.totalorder %s22, 0
      %p98 = por %p96, %p97
      %s100 = sadd.s32 %s99, 1
      %p103 = scmp.eq.s32.totalorder %s16, 1
      %p104 = scmp.ne.s32.totalorder %s99, %s101
      %p105 = scmp.eq.s32.totalorder %s16, 0
      %p106 = por %p104, %p105
      %p107 = scmp.ne.s32.totalorder %s99, %s101
      %p108 = scmp.eq.s32.totalorder %s21, 1
      %p109 = por %p107, %p108
      %p110 = scmp.ne.s32.totalorder %s101, %s102
      %p111 = scmp.eq.s32.totalorder %s21, 0
      %p112 = por %p110, %p111
      %p113 = scmp.ne.s32.totalorder %s101, %s102
      %p114 = scmp.eq.s32.totalorder %s22, 1
      %p115 = por %p113, %p114
      %p117 = scmp.ne.s32.totalorder %s102, %s116
      %p118 = scmp.eq.s32.totalorder %s22, 0
      %p119 = por %p117, %p118
      %s120 = ssub.s32 %s23, %s35
      %s121 = ssub.s32 %s24, %s31
      %s122 = sor.u32 %s120, %s121
      %p123 = scmp.eq.s32.totalorder %s122, 0
      %s125 = sadd.s32 %s124, 1
      %s126 = scalar_select %p123, %s124, %s125
      %p129 = pneg %p123
      %p130 = scmp.eq.s32.totalorder %s16, 1
      %p131 = por %p129, %p130
      %p132 = scmp.ne.s32.totalorder %s124, %s127
      %p133 = scmp.eq.s32.totalorder %s16, 0
      %p134 = por %p132, %p133
      %p135 = scmp.ne.s32.totalorder %s124, %s127
      %p136 = scmp.eq.s32.totalorder %s21, 1
      %p137 = por %p135, %p136
      %p138 = scmp.ne.s32.totalorder %s127, %s128
      %p139 = scmp.eq.s32.totalorder %s21, 0
      %p140 = por %p138, %p139
      %p141 = scmp.ne.s32.totalorder %s127, %s128
      %p142 = scmp.eq.s32.totalorder %s22, 1
      %p143 = por %p141, %p142
      %p145 = scmp.ne.s32.totalorder %s128, %s144
      %p146 = scmp.eq.s32.totalorder %s22, 0
      %p147 = por %p145, %p146
      %p148 = scmp.le.s32.totalorder 1, %s16
      %p149 = scmp.lt.s32.totalorder %s16, 3
      %p150 = pnand %p148, %p149
      %p151 = pneg %p150
      // Predicated region
      $region9: #{conv_block_forward.3} parent=5 // pred_check
        _
      $region10: #{conv_block_forward.3} parent=5 // pred_check_branch
        %153 = sbr.rel (%p150) target = $region12
      $region11: #{conv_block_forward.3} parent=5 // pred_region
        %s154 = ssub.s32 %s16, 1
        // Predicated region
        $region13: #{conv_block_forward.3} parent=11 // pred_check
          %p155 = pneg %p49
        $region14: #{conv_block_forward.3} parent=11 // pred_check_branch
          %157 = sbr.rel (%p155) target = $region16
        $region15: #{conv_block_forward.3} parent=11 // pred_region
          %s159 = ssub.s32 768, 768
          %160 = vsyncadd [#allocation3], %s159
          %s161 = sshll.u32 [#allocation2], 4
          %s162 = int_to_ptr.vmem [resolvable:$true] %s161
          %167 = dma.hbm_to_vmem [thread:$0]  %s0, 768, %s162, [#allocation3], 128, 128, 8
        $region16: #{conv_block_forward.3} parent=11 // pred_fallthru
          _
        // Predicated region
        $region17: #{conv_block_forward.3} parent=11 // pred_check
          %p168 = pneg %p70
        $region18: #{conv_block_forward.3} parent=11 // pred_check_branch
          %170 = sbr.rel (%p168) target = $region20
        $region19: #{conv_block_forward.3} parent=11 // pred_region
          %s172 = ssub.s32 1728, 1728
          %173 = vsyncadd [#allocation6], %s172
          %s174 = sshll.u32 [#allocation5], 4
          %s175 = int_to_ptr.vmem [resolvable:$true] %s174
          %180 = dma.hbm_to_vmem [thread:$0]  %s1, 1728, %s175, [#allocation6], 64, 64, 4
        $region20: #{conv_block_forward.3} parent=11 // pred_fallthru
          _
        // Predicated region
        $region21: #{conv_block_forward.3} parent=11 // pred_check
          %p181 = pneg %p91
        $region22: #{conv_block_forward.3} parent=11 // pred_check_branch
          %183 = sbr.rel (%p181) target = $region24
        $region23: #{conv_block_forward.3} parent=11 // pred_region
          %s185 = ssub.s32 16, 16
          %186 = vsyncadd [#allocation6], %s185
          %s188 = sshll.u32 [#allocation7], 4
          %s189 = int_to_ptr.vmem [resolvable:$true] %s188
          %191 = dma.hbm_to_vmem [thread:$0]  %s2, 16, %s189, [#allocation6]
        $region24: #{conv_block_forward.3} parent=11 // pred_fallthru
          _
        // Predicated region
        $region25: #{conv_block_forward.3} parent=11 // pred_check
          %p192 = pneg %p112
        $region26: #{conv_block_forward.3} parent=11 // pred_check_branch
          %194 = sbr.rel (%p192) target = $region28
        $region27: #{conv_block_forward.3} parent=11 // pred_region
          %s196 = ssub.s32 16, 16
          %197 = vsyncadd [#allocation9], %s196
          %s199 = sshll.u32 [#allocation8], 4
          %s200 = int_to_ptr.vmem [resolvable:$true] %s199
          %202 = dma.hbm_to_vmem [thread:$0]  %s3, 16, %s200, [#allocation9]
        $region28: #{conv_block_forward.3} parent=11 // pred_fallthru
          _
      $region12: #{conv_block_forward.3} parent=5 // pred_fallthru
        _
      %p203 = scmp.lt.s32.totalorder %s16, 2
      // Predicated region
      $region29: #{conv_block_forward.3} parent=5 // pred_check
        %p204 = pneg %p203
      $region30: #{conv_block_forward.3} parent=5 // pred_check_branch
        %206 = sbr.rel (%p204) target = $region32
      $region31: #{conv_block_forward.3} parent=5 // pred_region
        _
      $region32: #{conv_block_forward.3} parent=5 // pred_fallthru
        _
      %p207 = scmp.le.s32.totalorder 1, %s16
      %p208 = scmp.lt.s32.totalorder %s16, 3
      %p209 = pnand %p207, %p208
      %p210 = pneg %p209
      // Predicated region
      $region33: #{conv_block_forward.3} parent=5 // pred_check
        _
      $region34: #{conv_block_forward.3} parent=5 // pred_check_branch
        %212 = sbr.rel (%p209) target = $region36
      $region35: #{conv_block_forward.3} parent=5 // pred_region
        %s213 = ssub.s32 %s16, 1
        // Predicated region
        $region37: #{conv_block_forward.3} parent=35 // pred_check
          %p214 = pneg %p49
        $region38: #{conv_block_forward.3} parent=35 // pred_check_branch
          %216 = sbr.rel (%p214) target = $region40
        $region39: #{conv_block_forward.3} parent=35 // pred_region
          %217 = dma.done [#allocation3], 768
        $region40: #{conv_block_forward.3} parent=35 // pred_fallthru
          _
        // Predicated region
        $region41: #{conv_block_forward.3} parent=35 // pred_check
          %p218 = pneg %p70
        $region42: #{conv_block_forward.3} parent=35 // pred_check_branch
          %220 = sbr.rel (%p218) target = $region44
        $region43: #{conv_block_forward.3} parent=35 // pred_region
          %221 = dma.done [#allocation6], 1728
        $region44: #{conv_block_forward.3} parent=35 // pred_fallthru
          _
        // Predicated region
        $region45: #{conv_block_forward.3} parent=35 // pred_check
          %p222 = pneg %p91
        $region46: #{conv_block_forward.3} parent=35 // pred_check_branch
          %224 = sbr.rel (%p222) target = $region48
        $region47: #{conv_block_forward.3} parent=35 // pred_region
          %225 = dma.done [#allocation6], 16
        $region48: #{conv_block_forward.3} parent=35 // pred_fallthru
          _
        // Predicated region
        $region49: #{conv_block_forward.3} parent=35 // pred_check
          %p226 = pneg %p112
        $region50: #{conv_block_forward.3} parent=35 // pred_check_branch
          %228 = sbr.rel (%p226) target = $region52
        $region51: #{conv_block_forward.3} parent=35 // pred_region
          %229 = dma.done [#allocation9], 16
        $region52: #{conv_block_forward.3} parent=35 // pred_fallthru
          _
        %p230 = pneg %p49
        %p231 = pneg %p46
        %p232 = pneg %p70
        %p233 = pneg %p67
        %p234 = pneg %p91
        %p235 = pneg %p88
        %p236 = pneg %p112
        %p237 = pneg %p109
        %p238 = pneg %p140
        %p239 = pneg %p137
        %s240 = sand.u32 %s127, 1
        %s241 = scalar_lea.sflag [#allocation4], %s240
        %s242 = sand.u32 %s127, 1
        %s243 = smul.addr %s242, 16
        %s244 = scalar_lea.vmem [#allocation10], %s243
        %s245 = smul.u32 2, %s26
        %s247 = smul.u32 %s25, 24
        %s248 = smul.u32 %s26, 16
        %s249 = sadd.s32 %s247, %s248
        %s250 = scalar_lea.vmem [#allocation2], %s249
        %v251 = vld [vmem:[%s250] sm:$0xff]
        %v252 = vld [vmem:[%s250 + $0x8] sm:$0xff]
        %v253 = vld [vmem:[%s250 + $0x10] sm:$0x3]
        %v254 = vpack.c.bf16 %v252, %v251
        %v255 = vpack.c.bf16 %v253, %v253
        %v256 = vld [vmem:[#allocation5] sm:$0xf]
        %v257 = vld [vmem:[#allocation5 + $0x4] sm:$0xf]
        %v258 = vld [vmem:[#allocation5 + $0x8] sm:$0xf]
        %v259 = vld [vmem:[#allocation5 + $0xc] sm:$0xf]
        %v260 = vld [vmem:[#allocation5 + $0x10] sm:$0xf]
        %v261 = vld [vmem:[#allocation5 + $0x14] sm:$0xf]
        %v262 = vld [vmem:[#allocation5 + $0x18] sm:$0xf]
        %v263 = vld [vmem:[#allocation5 + $0x1c] sm:$0xf]
        %v264 = vld [vmem:[#allocation5 + $0x20] sm:$0xf]
        %s265 = scalar_lea.vmem [#allocation5], 36
        %v266 = vld [vmem:[%s265] sm:$0xf]
        %v267 = vld [vmem:[%s265 + $0x4] sm:$0xf]
        %v268 = vld [vmem:[%s265 + $0x8] sm:$0xf]
        %v269 = vld [vmem:[%s265 + $0xc] sm:$0xf]
        %v270 = vld [vmem:[%s265 + $0x10] sm:$0xf]
        %v271 = vld [vmem:[%s265 + $0x14] sm:$0xf]
        %v272 = vld [vmem:[%s265 + $0x18] sm:$0xf]
        %v273 = vld [vmem:[%s265 + $0x1c] sm:$0xf]
        %v274 = vld [vmem:[%s265 + $0x20] sm:$0xf]
        %vm275 = vsmask.f32 7424
        %v277 = vshrl.u32 %v254, 16
        %v279 = vshll.u32 %v254, 16
        %v281 = vrot.slane %v279, 1
        %v282 = vor.u32 %v277, %v281
        %v284 = vshll.u32 %v255, 16
        %v286 = vrot.slane %v284, 1
        %v287 = vsel %vm275, %v282, %v286
        %v297 = vunpack.c.l.b16 %v266
        %v298 = vunpack.c.l.b16 %v267
        %v299 = vunpack.c.l.b16 %v268
        %v300 = vunpack.c.l.b16 %v269
        %v301 = vunpack.c.l.b16 %v270
        %v302 = vunpack.c.l.b16 %v271
        %v303 = vunpack.c.l.b16 %v272
        %v304 = vunpack.c.l.b16 %v273
        %v305 = vunpack.c.l.b16 %v274
        %v306 = vpack.c.b16 %v298, %v297
        %v307 = vpack.c.b16 %v300, %v299
        %v308 = vpack.c.b16 %v302, %v301
        %v309 = vpack.c.b16 %v304, %v303
        %v310 = vpack.c.b16 %v305, %v305
        %vm315 = vcmask 588800
        %v317 = vsel %vm315, %v287, 0
        %vm319 = vcmask 1043456
        %v321 = vsel %vm319, %v310, 0
        %323 = vmatprep.subr.bf16.mxu0 0
        %324 = vmatpush1.bf16.msra.mxu0 %v306
        %325 = vmatprep.subr.bf16.mxu0 0
        %326 = vmatpush1.bf16.msra.mxu0 %v307
        %327 = vmatprep.subr.bf16.mxu0 0
        %328 = vmatpush1.bf16.msra.mxu0 %v308
        %329 = vmatprep.subr.bf16.mxu0 0
        %330 = vmatpush1.bf16.msra.mxu0 %v309
        %331 = vmatprep.subr.bf16.mxu0 0
        %332 = vmatpush1.bf16.msra.mxu0 %v321
        %333 = vmatprep.subr.bf16.mxu0 0
        %334 = vmatpush1.bf16.msra.mxu0 0
        %335 = vmatprep.subr.bf16.mxu0 0
        %336 = vmatpush1.bf16.msra.mxu0 0
        %337 = vmatprep.subr.bf16.mxu0 0
        %338 = vmatpush1.bf16.msra.mxu0 0
        %339 = vmatprep.subr.bf16.mxu0 0
        %340 = vmatpush1.bf16.msra.mxu0 0
        %341 = vmatprep.subr.bf16.mxu0 0
        %342 = vmatpush1.bf16.msra.mxu0 0
        %343 = vmatprep.subr.bf16.mxu0 0
        %344 = vmatpush1.bf16.msra.mxu0 0
        %345 = vmatprep.subr.bf16.mxu0 0
        %346 = vmatpush1.bf16.msra.mxu0 0
        %347 = vmatprep.subr.bf16.mxu0 0
        %348 = vmatpush1.bf16.msra.mxu0 0
        %349 = vmatprep.subr.bf16.mxu0 0
        %350 = vmatpush1.bf16.msra.mxu0 0
        %351 = vmatprep.subr.bf16.mxu0 0
        %352 = vmatpush1.bf16.msra.mxu0 0
        %353 = vmatprep.subr.bf16.mxu0 0
        %354 = vmatpush1.bf16.msra.mxu0 0
        %355 = vmatprep.mubr.bf16.mxu0 0
        %356 = vmatmul.mubr.bf16.gmra.mrb[0].mxu0 %v317
        %v357 = vpop.f32.mrb[0].mxu0
        %v358 = vadd.f32 0.0, %v357
        %v359 = vpop.f32.mrb[0].mxu0
        %v360 = vpop.f32.mrb[0].mxu0
        %v361 = vadd.f32 0.0, %v360
        %v362 = vpop.f32.mrb[0].mxu0
        %363 = vdwg.mxu0
        %v373 = vunpack.c.l.b16 %v256
        %v374 = vunpack.c.l.b16 %v257
        %v375 = vunpack.c.l.b16 %v258
        %v376 = vunpack.c.l.b16 %v259
        %v377 = vunpack.c.l.b16 %v260
        %v378 = vunpack.c.l.b16 %v261
        %v379 = vunpack.c.l.b16 %v262
        %v380 = vunpack.c.l.b16 %v263
        %v381 = vunpack.c.l.b16 %v264
        %v382 = vpack.c.b16 %v374, %v373
        %v383 = vpack.c.b16 %v376, %v375
        %v384 = vpack.c.b16 %v378, %v377
        %v385 = vpack.c.b16 %v380, %v379
        %v386 = vpack.c.b16 %v381, %v381
        %v391 = vsel %vm315, %v254, 0
        %v394 = vsel %vm319, %v386, 0
        %396 = vmatprep.subr.bf16.mxu0 0
        %397 = vmatpush1.bf16.msra.mxu0 %v382
        %398 = vmatprep.subr.bf16.mxu0 0
        %399 = vmatpush1.bf16.msra.mxu0 %v383
        %400 = vmatprep.subr.bf16.mxu0 0
        %401 = vmatpush1.bf16.msra.mxu0 %v384
        %402 = vmatprep.subr.bf16.mxu0 0
        %403 = vmatpush1.bf16.msra.mxu0 %v385
        %404 = vmatprep.subr.bf16.mxu0 0
        %405 = vmatpush1.bf16.msra.mxu0 %v394
        %406 = vmatprep.subr.bf16.mxu0 0
        %407 = vmatpush1.bf16.msra.mxu0 0
        %408 = vmatprep.subr.bf16.mxu0 0
        %409 = vmatpush1.bf16.msra.mxu0 0
        %410 = vmatprep.subr.bf16.mxu0 0
        %411 = vmatpush1.bf16.msra.mxu0 0
        %412 = vmatprep.subr.bf16.mxu0 0
        %413 = vmatpush1.bf16.msra.mxu0 0
        %414 = vmatprep.subr.bf16.mxu0 0
        %415 = vmatpush1.bf16.msra.mxu0 0
        %416 = vmatprep.subr.bf16.mxu0 0
        %417 = vmatpush1.bf16.msra.mxu0 0
        %418 = vmatprep.subr.bf16.mxu0 0
        %419 = vmatpush1.bf16.msra.mxu0 0
        %420 = vmatprep.subr.bf16.mxu0 0
        %421 = vmatpush1.bf16.msra.mxu0 0
        %422 = vmatprep.subr.bf16.mxu0 0
        %423 = vmatpush1.bf16.msra.mxu0 0
        %424 = vmatprep.subr.bf16.mxu0 0
        %425 = vmatpush1.bf16.msra.mxu0 0
        %426 = vmatprep.subr.bf16.mxu0 0
        %427 = vmatpush1.bf16.msra.mxu0 0
        %428 = vmatprep.mubr.bf16.mxu0 0
        %429 = vmatmul.mubr.bf16.gmra.mrb[0].mxu0 %v391
        %v430 = vpop.f32.mrb[0].mxu0
        %v431 = vadd.f32 %v358, %v430
        %v432 = vpop.f32.mrb[0].mxu0
        %v433 = vpop.f32.mrb[0].mxu0
        %v434 = vadd.f32 %v361, %v433
        %v435 = vpop.f32.mrb[0].mxu0
        %436 = vdwg.mxu0
        %s437 = scalar_lea.vmem [#allocation5], 72
        %v438 = vld [vmem:[%s437] sm:$0xf]
        %v439 = vld [vmem:[%s437 + $0x4] sm:$0xf]
        %v440 = vld [vmem:[%s437 + $0x8] sm:$0xf]
        %v441 = vld [vmem:[%s437 + $0xc] sm:$0xf]
        %v442 = vld [vmem:[%s437 + $0x10] sm:$0xf]
        %v443 = vld [vmem:[%s437 + $0x14] sm:$0xf]
        %v444 = vld [vmem:[%s437 + $0x18] sm:$0xf]
        %v445 = vld [vmem:[%s437 + $0x1c] sm:$0xf]
        %v446 = vld [vmem:[%s437 + $0x20] sm:$0xf]
        %vm449 = vcmask 1046528
        %v450 = vrot.slane %v254, 1
        %v451 = vrot.slane %v255, 1
        %v452 = vsel %vm449, %v450, %v451
        %v462 = vunpack.c.l.b16 %v438
        %v463 = vunpack.c.l.b16 %v439
        %v464 = vunpack.c.l.b16 %v440
        %v465 = vunpack.c.l.b16 %v441
        %v466 = vunpack.c.l.b16 %v442
        %v467 = vunpack.c.l.b16 %v443
        %v468 = vunpack.c.l.b16 %v444
        %v469 = vunpack.c.l.b16 %v445
        %v470 = vunpack.c.l.b16 %v446
        %v471 = vpack.c.b16 %v463, %v462
        %v472 = vpack.c.b16 %v465, %v464
        %v473 = vpack.c.b16 %v467, %v466
        %v474 = vpack.c.b16 %v469, %v468
        %v475 = vpack.c.b16 %v470, %v470
        %v481 = vsel %vm315, %v452, 0
        %v484 = vsel %vm319, %v475, 0
        %486 = vmatprep.subr.bf16.mxu0 0
        %487 = vmatpush1.bf16.msra.mxu0 %v471
        %488 = vmatprep.subr.bf16.mxu0 0
        %489 = vmatpush1.bf16.msra.mxu0 %v472
        %490 = vmatprep.subr.bf16.mxu0 0
        %491 = vmatpush1.bf16.msra.mxu0 %v473
        %492 = vmatprep.subr.bf16.mxu0 0
        %493 = vmatpush1.bf16.msra.mxu0 %v474
        %494 = vmatprep.subr.bf16.mxu0 0
        %495 = vmatpush1.bf16.msra.mxu0 %v484
        %496 = vmatprep.subr.bf16.mxu0 0
        %497 = vmatpush1.bf16.msra.mxu0 0
        %498 = vmatprep.subr.bf16.mxu0 0
        %499 = vmatpush1.bf16.msra.mxu0 0
        %500 = vmatprep.subr.bf16.mxu0 0
        %501 = vmatpush1.bf16.msra.mxu0 0
        %502 = vmatprep.subr.bf16.mxu0 0
        %503 = vmatpush1.bf16.msra.mxu0 0
        %504 = vmatprep.subr.bf16.mxu0 0
        %505 = vmatpush1.bf16.msra.mxu0 0
        %506 = vmatprep.subr.bf16.mxu0 0
        %507 = vmatpush1.bf16.msra.mxu0 0
        %508 = vmatprep.subr.bf16.mxu0 0
        %509 = vmatpush1.bf16.msra.mxu0 0
        %510 = vmatprep.subr.bf16.mxu0 0
        %511 = vmatpush1.bf16.msra.mxu0 0
        %512 = vmatprep.subr.bf16.mxu0 0
        %513 = vmatpush1.bf16.msra.mxu0 0
        %514 = vmatprep.subr.bf16.mxu0 0
        %515 = vmatpush1.bf16.msra.mxu0 0
        %516 = vmatprep.subr.bf16.mxu0 0
        %517 = vmatpush1.bf16.msra.mxu0 0
        %518 = vmatprep.mubr.bf16.mxu0 0
        %519 = vmatmul.mubr.bf16.gmra.mrb[0].mxu0 %v481
        %v520 = vpop.f32.mrb[0].mxu0
        %v521 = vadd.f32 0.0, %v520
        %v522 = vpop.f32.mrb[0].mxu0
        %v523 = vpop.f32.mrb[0].mxu0
        %v524 = vadd.f32 0.0, %v523
        %v525 = vpop.f32.mrb[0].mxu0
        %526 = vdwg.mxu0
        %v527 = vadd.f32 %v431, %v521
        %v528 = vadd.f32 %v434, %v524
        %v529 = vld [vmem:[#allocation7] sm:$0x1]
        %v531 = vlaneseq
        %v532 = vshrl.u32 %v531, 7
        %v533 = vsub.s32 0, %v532
        %v534 = vrot.slane %v529, %v533
        %v536 = vmul.f32 %v527, %v534
        %v537 = vmul.f32 %v528, %v534
        %v538 = vld [vmem:[#allocation8] sm:$0x1]
        %v540 = vlaneseq
        %v541 = vshrl.u32 %v540, 7
        %v542 = vsub.s32 0, %v541
        %v543 = vrot.slane %v538, %v542
        %v545 = vadd.f32 %v536, %v543
        %v546 = vadd.f32 %v537, %v543
        %v547 = vmax.f32 %v545, 0.0
        %v548 = vmax.f32 %v546, 0.0
        %549 = vst [vmem:[%s244] sm:$0xff] %v547
        %550 = vst [vmem:[%s244 + $0x8] sm:$0xff] %v548
        %s551 = sand.u32 %s127, 1
        %s552 = scalar_lea.sflag [#allocation4], %s551
        %s553 = sand.u32 %s127, 1
        %s554 = smul.addr %s553, 16
        %s555 = scalar_lea.vmem [#allocation10], %s554
        // Predicated region
        $region53: #{conv_block_forward.3} parent=35 // pred_check
          %p556 = pneg %p137
        $region54: #{conv_block_forward.3} parent=35 // pred_check_branch
          %558 = sbr.rel (%p556) target = $region56
        $region55: #{conv_block_forward.3} parent=35 // pred_region
          %s559 = smul.u32 2, %s26
          %s561 = ssub.s32 256, 256
          %562 = vsyncadd %s552, %s561
          %s563 = smul.addr %s25, 2
          %s564 = sadd.s32 %s559, %s563
          %s565 = smul.addr %s564, 128
          %s566 = scalar_lea.hbm %s4, %s565
          %s567 = sshll.u32 %s555, 4
          %s568 = int_to_ptr.vmem [resolvable:$true] %s567
          %573 = dma.vmem_to_hbm [thread:$0]  %s568, 256, %s566, %s552, 128, 128, 8
        $region56: #{conv_block_forward.3} parent=35 // pred_fallthru
          _
      $region36: #{conv_block_forward.3} parent=5 // pred_fallthru
        _
      %p574 = scmp.le.s32.totalorder 2, %s16
      // Predicated region
      $region57: #{conv_block_forward.3} parent=5 // pred_check
        %p575 = pneg %p574
      $region58: #{conv_block_forward.3} parent=5 // pred_check_branch
        %577 = sbr.rel (%p575) target = $region60
      $region59: #{conv_block_forward.3} parent=5 // pred_region
        %s578 = ssub.s32 %s16, 2
        // Predicated region
        $region61: #{conv_block_forward.3} parent=59 // pred_check
          %p579 = pneg %p143
        $region62: #{conv_block_forward.3} parent=59 // pred_check_branch
          %581 = sbr.rel (%p579) target = $region64
        $region63: #{conv_block_forward.3} parent=59 // pred_region
          %s582 = sand.u32 %s128, 1
          %s583 = scalar_lea.sflag [#allocation4], %s582
          %s584 = sand.u32 %s128, 1
          %s585 = smul.addr %s584, 16
          %s586 = scalar_lea.vmem [#allocation10], %s585
          %587 = dma.done %s583, 256
        $region64: #{conv_block_forward.3} parent=59 // pred_fallthru
          _
      $region60: #{conv_block_forward.3} parent=5 // pred_fallthru
        _
    $region6: #{conv_block_forward.3} parent=1 // loop_footer
      %s20 = sadd.s32 1, %s16
    $region7: #{conv_block_forward.3} parent=1 // loop_footer_branch
      %15 = sbr.rel target = $region3
    $region8: #{conv_block_forward.3} parent=1 // loop_exit
      _
    %588 = vsyncpa [#allocation3], 1
    %s589 = scalar_lea.sflag [#allocation3], 1
    %590 = vsyncpa %s589, 1
    %591 = vsyncpa [#allocation6], 1
    %592 = vsyncpa [#allocation9], 1
    %593 = vsyncpa [#allocation4], 1
    %s594 = scalar_lea.sflag [#allocation4], 1
    %595 = vsyncpa %s594, 1

</llo_original>
